<compile_context>
chip_gen: v7x
topology: tpu7x:2x2x1
jax: 0.10.0
libtpu: 0.0.40
codegen_flags: <defaults>
</compile_context>

<pallas_src>
import functools
import math

import numpy as np
import jax
import jax.numpy as jnp
from jax.experimental import pallas as pl
from jax.experimental.pallas import tpu as pltpu


# ----------------------------------------------------------------------------
# helpers
# ----------------------------------------------------------------------------
def _round_up(x, m):
    return ((x + m - 1) // m) * m


def _pad2d(a, rows, cols, dtype=None):
    r, c = a.shape
    out = a
    if r != rows or c != cols:
        out = jnp.pad(a, ((0, rows - r), (0, cols - c)))
    if dtype is not None and out.dtype != np.dtype(dtype):
        out = out.astype(dtype)
    return out


def _vmem_budget_bytes():
    """Generation-aware usable-VMEM budget (~75% of physical capacity)."""
    cap = None
    try:
        info = pltpu.get_tpu_info()
        cap = getattr(info, "vmem_capacity_bytes", None)
    except Exception:
        cap = None
    if not cap:
        cap = 64 * 1024 * 1024  # conservative (v7x-sized) fallback
    # ~96 MiB on v5e/v6e (128 MiB physical), ~48 MiB on v7x (64 MiB physical)
    return int(cap) * 3 // 4


def _tile_plan(n):
    """(n_pad, tm, tk) for the tiled path; tiles divide n_pad exactly."""
    n128 = _round_up(n, 128)
    if n128 <= 256:
        return n128, 128, 128          # 1-2 row tiles, tiny graphs
    n_pad = _round_up(n, 256)          # always >= 512 here -> >= 2 row tiles
    tm = 256
    tk = 512 if n_pad % 512 == 0 else 256
    return n_pad, tm, tk


# ----------------------------------------------------------------------------
# Fused two-layer GCN kernel (small graphs: everything resident in VMEM)
# ----------------------------------------------------------------------------
def _fused_gcn_kernel(x_ref, adj_ref, w1_ref, w2_ref, o_ref, *, compute_dtype):
    adj = adj_ref[...]
    # layer 1: relu(adj @ (x @ W1))
    s1 = jnp.dot(x_ref[...], w1_ref[...], preferred_element_type=jnp.float32)
    t1 = jnp.dot(adj, s1.astype(compute_dtype), preferred_element_type=jnp.float32)
    x2 = jnp.maximum(t1, 0.0).astype(compute_dtype)
    # dropout: identity in eval mode
    # layer 2: relu(adj @ (x2 @ W2))
    s2 = jnp.dot(x2, w2_ref[...], preferred_element_type=jnp.float32)
    t2 = jnp.dot(adj, s2.astype(compute_dtype), preferred_element_type=jnp.float32)
    o_ref[...] = jnp.maximum(t2, 0.0).astype(o_ref.dtype)


def _fused_gcn(xp, adjp, w1p, w2p, compute_dtype, vmem_limit):
    n_pad, in_p = xp.shape
    hid_p = w1p.shape[1]
    out_p = w2p.shape[1]
    return pl.pallas_call(
        functools.partial(_fused_gcn_kernel, compute_dtype=compute_dtype),
        out_shape=jax.ShapeDtypeStruct((n_pad, out_p), jnp.float32),
        grid_spec=pltpu.PrefetchScalarGridSpec(
            num_scalar_prefetch=0,
            grid=(1,),
            in_specs=[
                pl.BlockSpec((n_pad, in_p), lambda i: (0, 0)),
                pl.BlockSpec((n_pad, n_pad), lambda i: (0, 0)),
                pl.BlockSpec((in_p, hid_p), lambda i: (0, 0)),
                pl.BlockSpec((hid_p, out_p), lambda i: (0, 0)),
            ],
            out_specs=pl.BlockSpec((n_pad, out_p), lambda i: (0, 0)),
        ),
        compiler_params=pltpu.CompilerParams(
            dimension_semantics=("arbitrary",),
            vmem_limit_bytes=vmem_limit,
        ),
    )(xp, adjp, w1p, w2p)


# ----------------------------------------------------------------------------
# Per-layer fused kernel (large graphs): relu(adj @ (x @ W)) in one launch.
#   grid = (row tiles of adj/out, K tiles over adj cols / x rows)
#   W resident (constant index), support K-strip recomputed per (i, k) step.
# ----------------------------------------------------------------------------
def _gcn_layer_kernel(adj_ref, x_ref, w_ref, o_ref, *scratch, compute_dtype):
    k = pl.program_id(1)
    acc_ref = scratch[0] if scratch else o_ref  # f32 out -> accumulate in place

    @pl.when(k == 0)
    def _():
        acc_ref[...] = jnp.zeros_like(acc_ref)

    strip = jnp.dot(x_ref[...], w_ref[...], preferred_element_type=jnp.float32)
    acc_ref[...] += jnp.dot(adj_ref[...], strip.astype(compute_dtype),
                            preferred_element_type=jnp.float32)

    @pl.when(k == pl.num_programs(1) - 1)
    def _():
        o_ref[...] = jnp.maximum(acc_ref[...], 0.0).astype(o_ref.dtype)


def gcn_layer(adjp, xp, wp, *, tm, tk, out_dtype, compute_dtype, vmem_limit):
    """relu(adjp @ (xp @ wp)) for pre-padded, tile-aligned operands."""
    n_pad = adjp.shape[0]
    f_in = xp.shape[1]
    f_out = wp.shape[1]
    assert adjp.shape == (n_pad, n_pad)
    assert xp.shape[0] == n_pad and wp.shape[0] == f_in
    assert n_pad % tm == 0 and n_pad % tk == 0

    grid = (n_pad // tm, n_pad // tk)
    # f32 outputs accumulate straight into the VMEM-resident output block;
    # narrower outputs use an f32 scratch and cast once in the epilogue.
    scratch_shapes = []
    if np.dtype(out_dtype) != np.dtype(np.float32):
        scratch_shapes = [pltpu.VMEM((tm, f_out), jnp.float32)]

    return pl.pallas_call(
        functools.partial(_gcn_layer_kernel, compute_dtype=compute_dtype),
        out_shape=jax.ShapeDtypeStruct((n_pad, f_out), out_dtype),
        grid_spec=pltpu.PrefetchScalarGridSpec(
            num_scalar_prefetch=0,
            grid=grid,
            in_specs=[
                pl.BlockSpec((tm, tk), lambda i, k: (i, k)),        # adj tile
                pl.BlockSpec((tk, f_in), lambda i, k: (k, 0)),      # x K-strip
                pl.BlockSpec((f_in, f_out), lambda i, k: (0, 0)),   # W resident
            ],
            out_specs=pl.BlockSpec((tm, f_out), lambda i, k: (i, 0)),
            scratch_shapes=scratch_shapes,
        ),
        compiler_params=pltpu.CompilerParams(
            dimension_semantics=("parallel", "arbitrary"),
            vmem_limit_bytes=vmem_limit,
        ),
    )(adjp, xp, wp)


# ----------------------------------------------------------------------------
# Full forward
# ----------------------------------------------------------------------------
@functools.partial(jax.jit, static_argnames=("compute_dtype", "force_tiled"))
def graph_convolution_forward(x, adj, w1, w2, *,
                              compute_dtype=jnp.bfloat16,
                              force_tiled=False):
    n, in_dim = x.shape
    hid = w1.shape[1]
    out_dim = w2.shape[1]

    in_p = _round_up(in_dim, 128)
    hid_p = _round_up(hid, 128)
    out_p = _round_up(out_dim, 128)

    vmem_limit = _vmem_budget_bytes()
    cbytes = np.dtype(compute_dtype).itemsize

    # ----- fully-fused small-graph path --------------------------------------
    n_fused = _round_up(n, 128)  # lane-dense adj + full MXU contraction
    resident = 2 * cbytes * (n_fused * in_p + n_fused * n_fused
                             + in_p * hid_p + hid_p * out_p)   # inputs, x2 bufs
    resident += 4 * n_fused * (2 * hid_p + 2 * out_p)          # f32 intermediates
    resident += 2 * 4 * n_fused * out_p                        # output bufs

    if (not force_tiled) and resident <= vmem_limit // 2:
        xp = _pad2d(x, n_fused, in_p, compute_dtype)
        adjp = _pad2d(adj, n_fused, n_fused, compute_dtype)
        w1p = _pad2d(w1, in_p, hid_p, compute_dtype)
        w2p = _pad2d(w2, hid_p, out_p, compute_dtype)
        out_full = _fused_gcn(xp, adjp, w1p, w2p, compute_dtype, vmem_limit)
        return out_full[:n, :out_dim]

    # ----- tiled, per-layer-fused path ---------------------------------------
    n_pad, tm, tk = _tile_plan(n)
    adjp = _pad2d(adj, n_pad, n_pad, compute_dtype)   # padded ONCE, reused twice
    xp = _pad2d(x, n_pad, in_p, compute_dtype)
    w1p = _pad2d(w1, in_p, hid_p, compute_dtype)
    w2p = _pad2d(w2, hid_p, out_p, compute_dtype)

    # layer 1: x2 = relu(adj @ (x @ W1)); intermediate emitted in compute dtype
    x2p = gcn_layer(adjp, xp, w1p, tm=tm, tk=tk,
                    out_dtype=compute_dtype, compute_dtype=compute_dtype,
                    vmem_limit=vmem_limit)
    # dropout: identity in eval mode
    # layer 2: out = relu(adj @ (x2 @ W2)); final output in f32
    outp = gcn_layer(adjp, x2p, w2p, tm=tm, tk=tk,
                     out_dtype=jnp.float32, compute_dtype=compute_dtype,
                     vmem_limit=vmem_limit)
    return outp[:n, :out_dim]


def init_gcn_weight(key, in_features, out_features):
    # matches reset_parameters(): uniform(-stdv, stdv), stdv = 1/sqrt(out_features)
    stdv = 1.0 / math.sqrt(out_features)
    return jax.random.uniform(
        key, (in_features, out_features), dtype=jnp.float32,
        minval=-stdv, maxval=stdv,
    )


if __name__ == "__main__":
    N_NODES, IN_DIM, HID_DIM, OUT_DIM = 64, 16, 32, 8

    key = jax.random.PRNGKey(0)
    k_x, k_adj, k_w1, k_w2 = jax.random.split(key, 4)

    x = jax.random.normal(k_x, (N_NODES, IN_DIM), dtype=jnp.float32)
    a_raw = jax.random.uniform(k_adj, (N_NODES, N_NODES), dtype=jnp.float32)
    adj = (a_raw + a_raw.T) / (2.0 * N_NODES)

    w1 = init_gcn_weight(k_w1, IN_DIM, HID_DIM)
    w2 = init_gcn_weight(k_w2, HID_DIM, OUT_DIM)

    # reference (plain JAX, same op order as PyTorch)
    tmp = adj @ (x @ w1)
    x2_ref = jnp.maximum(tmp, 0.0)
    ref = jnp.maximum(adj @ (x2_ref @ w2), 0.0)

    # 1) fused single-kernel path (f32)
    out_fused = jax.block_until_ready(
        graph_convolution_forward(x, adj, w1, w2, compute_dtype=jnp.float32))
    assert out_fused.shape == (N_NODES, OUT_DIM)
    assert jnp.allclose(out_fused, ref, atol=1e-4, rtol=1e-4)

    # 2) tiled per-layer-fused path (f32), exercised on the same inputs
    out_tiled = jax.block_until_ready(
        graph_convolution_forward(x, adj, w1, w2,
                                  compute_dtype=jnp.float32, force_tiled=True))
    assert out_tiled.shape == (N_NODES, OUT_DIM)
    assert jnp.allclose(out_tiled, ref, atol=1e-4, rtol=1e-4)

    # 3) default bf16-operand / f32-accumulate path (looser tolerance)
    out_bf16 = jax.block_until_ready(graph_convolution_forward(x, adj, w1, w2))
    assert out_bf16.shape == (N_NODES, OUT_DIM)
    max_err = jnp.max(jnp.abs(out_bf16 - ref))
    assert max_err <= 0.05 * (jnp.max(jnp.abs(ref)) + 1e-6)

    # 4) bf16 tiled path (exercises bf16 epilogue + scratch accumulator)
    out_bf16_t = jax.block_until_ready(
        graph_convolution_forward(x, adj, w1, w2, force_tiled=True))
    max_err_t = jnp.max(jnp.abs(out_bf16_t - ref))
    assert max_err_t <= 0.05 * (jnp.max(jnp.abs(ref)) + 1e-6)

    print("KERNEL_OK")
</pallas_src>

<mosaic_0001>
module attributes {stable_mosaic.version = 11 : i64} {
  func.func @_fused_gcn_kernel(%arg0: i32, %arg1: memref<128x128xf32, #tpu.memory_space<vmem>>, %arg2: memref<128x128xf32, #tpu.memory_space<vmem>>, %arg3: memref<128x128xf32, #tpu.memory_space<vmem>>, %arg4: memref<128x128xf32, #tpu.memory_space<vmem>>, %arg5: memref<128x128xf32, #tpu.memory_space<vmem>>) attributes {dimension_semantics = [#tpu.dimension_semantics<arbitrary>], iteration_bounds = array<i64: 1>, scalar_prefetch = 0 : i64, scratch_operands = 0 : i64, tpu.core_type = #tpu.core_type<tc>, window_params = [{pipeline_mode = #tpu.pipeline_mode<synchronous>, transform_indices = @transform_0, window_bounds = array<i64: 128, 128>}, {pipeline_mode = #tpu.pipeline_mode<synchronous>, transform_indices = @transform_1, window_bounds = array<i64: 128, 128>}, {pipeline_mode = #tpu.pipeline_mode<synchronous>, transform_indices = @transform_2, window_bounds = array<i64: 128, 128>}, {pipeline_mode = #tpu.pipeline_mode<synchronous>, transform_indices = @transform_3, window_bounds = array<i64: 128, 128>}, {pipeline_mode = #tpu.pipeline_mode<synchronous>, transform_indices = @transform_4, window_bounds = array<i64: 128, 128>}]} {
    %c0 = arith.constant 0 : index
    %c0_0 = arith.constant 0 : index
    %0 = vector.load %arg2[%c0, %c0_0] : memref<128x128xf32, #tpu.memory_space<vmem>>, vector<128x128xf32>
    %c0_1 = arith.constant 0 : index
    %c0_2 = arith.constant 0 : index
    %1 = vector.load %arg1[%c0_1, %c0_2] : memref<128x128xf32, #tpu.memory_space<vmem>>, vector<128x128xf32>
    %c0_3 = arith.constant 0 : index
    %c0_4 = arith.constant 0 : index
    %2 = vector.load %arg3[%c0_3, %c0_4] : memref<128x128xf32, #tpu.memory_space<vmem>>, vector<128x128xf32>
    %cst = arith.constant dense<0.000000e+00> : vector<128x128xf32>
    %3 = tpu.matmul %1, %2, %cst {dimension_numbers = #tpu.dot_dimension_numbers<[1], [0], [0], [1], [0, 0, 1, 1], [], []>} : vector<128x128xf32>, vector<128x128xf32>, vector<128x128xf32> -> vector<128x128xf32>
    %cst_5 = arith.constant dense<0.000000e+00> : vector<128x128xf32>
    %4 = tpu.matmul %0, %3, %cst_5 {dimension_numbers = #tpu.dot_dimension_numbers<[1], [0], [0], [1], [0, 0, 1, 1], [], []>} : vector<128x128xf32>, vector<128x128xf32>, vector<128x128xf32> -> vector<128x128xf32>
    %cst_6 = arith.constant 0.000000e+00 : f32
    %5 = vector.broadcast %cst_6 : f32 to vector<128x128xf32>
    %6 = arith.maximumf %4, %5 : vector<128x128xf32>
    %c0_7 = arith.constant 0 : index
    %c0_8 = arith.constant 0 : index
    %7 = vector.load %arg4[%c0_7, %c0_8] : memref<128x128xf32, #tpu.memory_space<vmem>>, vector<128x128xf32>
    %cst_9 = arith.constant dense<0.000000e+00> : vector<128x128xf32>
    %8 = tpu.matmul %6, %7, %cst_9 {dimension_numbers = #tpu.dot_dimension_numbers<[1], [0], [0], [1], [0, 0, 1, 1], [], []>} : vector<128x128xf32>, vector<128x128xf32>, vector<128x128xf32> -> vector<128x128xf32>
    %cst_10 = arith.constant dense<0.000000e+00> : vector<128x128xf32>
    %9 = tpu.matmul %0, %8, %cst_10 {dimension_numbers = #tpu.dot_dimension_numbers<[1], [0], [0], [1], [0, 0, 1, 1], [], []>} : vector<128x128xf32>, vector<128x128xf32>, vector<128x128xf32> -> vector<128x128xf32>
    %cst_11 = arith.constant 0.000000e+00 : f32
    %10 = vector.broadcast %cst_11 : f32 to vector<128x128xf32>
    %11 = arith.maximumf %9, %10 : vector<128x128xf32>
    %c0_12 = arith.constant 0 : index
    %c0_13 = arith.constant 0 : index
    %12 = vector.load %arg5[%c0_12, %c0_13] : memref<128x128xf32, #tpu.memory_space<vmem>>, vector<128x128xf32>
    tpu.vector_store %arg5[%c0_12, %c0_13], %11 {strides = array<i32>} : memref<128x128xf32, #tpu.memory_space<vmem>>, vector<128x128xf32>,
    return
  }
  func.func @transform_0(%arg0: i32) -> (i32, i32) {
    %c0_i32 = arith.constant 0 : i32
    %c0_i32_0 = arith.constant 0 : i32
    %c0_i32_1 = arith.constant 0 : i32
    return %c0_i32, %c0_i32_0 : i32, i32
  }
  func.func @transform_1(%arg0: i32) -> (i32, i32) {
    %c0_i32 = arith.constant 0 : i32
    %c0_i32_0 = arith.constant 0 : i32
    %c0_i32_1 = arith.constant 0 : i32
    return %c0_i32, %c0_i32_0 : i32, i32
  }
  func.func @transform_2(%arg0: i32) -> (i32, i32) {
    %c0_i32 = arith.constant 0 : i32
    %c0_i32_0 = arith.constant 0 : i32
    %c0_i32_1 = arith.constant 0 : i32
    return %c0_i32, %c0_i32_0 : i32, i32
  }
  func.func @transform_3(%arg0: i32) -> (i32, i32) {
    %c0_i32 = arith.constant 0 : i32
    %c0_i32_0 = arith.constant 0 : i32
    %c0_i32_1 = arith.constant 0 : i32
    return %c0_i32, %c0_i32_0 : i32, i32
  }
  func.func @transform_4(%arg0: i32) -> (i32, i32) {
    %c0_i32 = arith.constant 0 : i32
    %c0_i32_0 = arith.constant 0 : i32
    %c0_i32_1 = arith.constant 0 : i32
    return %c0_i32, %c0_i32_0 : i32, i32
  }
}

</mosaic_0001>

<llo_original>
// kernel: graph_convolution_forward.1
$region0: #{graph_convolution_forward.1}
  #allocation0 [shape = 'u32[]', space=smem, size = 0x4, offset = 0x4, fixed_abs, tag = 'smem constant byte address 0x4 - core index']
  #allocation1 [shape = 'u32[144,128]{1,0:T(1,128)}', space=vmem, size = 0x12000, scoped, tag = 'internal scratch']
  %s0 = inlined_call_operand.vmem [shape: f32[128,128], index: 0, kind: input, shape index: {}]
  %s1 = inlined_call_operand.vmem [shape: f32[128,128], index: 1, kind: input, shape index: {}]
  %s2 = inlined_call_operand.vmem [shape: f32[128,128], index: 2, kind: input, shape index: {}]
  %s3 = inlined_call_operand.vmem [shape: f32[128,128], index: 3, kind: input, shape index: {}]
  %s4 = inlined_call_operand.vmem [shape: f32[128,128], index: 4, kind: output, shape index: {}]
  %s5 = sld [smem:[#allocation0]]
  $region26: #{graph_convolution_forward.1} parent=0
    _
  %s7 = ssub.s32 1, %s5
  %s8 = scalar_select 0, %s7, %s5
  // Predicated region
  $region2: #{graph_convolution_forward.1} parent=0 // pred_check
    _
  $region3: #{graph_convolution_forward.1} parent=0 // pred_check_branch
    %10 = sbr.rel (0) target = $region5
  $region4: #{graph_convolution_forward.1} parent=0 // pred_region
    _
  $region5: #{graph_convolution_forward.1} parent=0 // pred_fallthru
    _
  // Predicated region
  $region6: #{graph_convolution_forward.1} parent=0 // pred_check
    _
  $region7: #{graph_convolution_forward.1} parent=0 // pred_check_branch
    %12 = sbr.rel (0) target = $region9
  $region8: #{graph_convolution_forward.1} parent=0 // pred_region
    _
  $region9: #{graph_convolution_forward.1} parent=0 // pred_fallthru
    _
  // Predicated region
  $region10: #{graph_convolution_forward.1} parent=0 // pred_check
    _
  $region11: #{graph_convolution_forward.1} parent=0 // pred_check_branch
    %14 = sbr.rel (0) target = $region13
  $region12: #{graph_convolution_forward.1} parent=0 // pred_region
    _
  $region13: #{graph_convolution_forward.1} parent=0 // pred_fallthru
    _
  // Predicated region
  $region14: #{graph_convolution_forward.1} parent=0 // pred_check
    _
  $region15: #{graph_convolution_forward.1} parent=0 // pred_check_branch
    %16 = sbr.rel (0) target = $region17
  $region16: #{graph_convolution_forward.1} parent=0 // pred_region
    _
  $region17: #{graph_convolution_forward.1} parent=0 // pred_fallthru
    _
  %v17 = vld [vmem:[%s1] sm:$0xff]
  %v18 = vld [vmem:[%s1 + $0x8] sm:$0xff]
  %v19 = vld [vmem:[%s1 + $0x10] sm:$0xff]
  %v20 = vld [vmem:[%s1 + $0x18] sm:$0xff]
  %v21 = vld [vmem:[%s1 + $0x20] sm:$0xff]
  %v22 = vld [vmem:[%s1 + $0x28] sm:$0xff]
  %v23 = vld [vmem:[%s1 + $0x30] sm:$0xff]
  %v24 = vld [vmem:[%s1 + $0x38] sm:$0xff]
  %v25 = vld [vmem:[%s1 + $0x40] sm:$0xff]
  %v26 = vld [vmem:[%s1 + $0x48] sm:$0xff]
  %v27 = vld [vmem:[%s1 + $0x50] sm:$0xff]
  %v28 = vld [vmem:[%s1 + $0x58] sm:$0xff]
  %v29 = vld [vmem:[%s1 + $0x60] sm:$0xff]
  %v30 = vld [vmem:[%s1 + $0x68] sm:$0xff]
  %v31 = vld [vmem:[%s1 + $0x70] sm:$0xff]
  %v32 = vld [vmem:[%s1 + $0x78] sm:$0xff]
  %v33 = vld [vmem:[%s0] sm:$0xff]
  %v34 = vld [vmem:[%s0 + $0x8] sm:$0xff]
  %v35 = vld [vmem:[%s0 + $0x10] sm:$0xff]
  %v36 = vld [vmem:[%s0 + $0x18] sm:$0xff]
  %v37 = vld [vmem:[%s0 + $0x20] sm:$0xff]
  %v38 = vld [vmem:[%s0 + $0x28] sm:$0xff]
  %v39 = vld [vmem:[%s0 + $0x30] sm:$0xff]
  %v40 = vld [vmem:[%s0 + $0x38] sm:$0xff]
  %v41 = vld [vmem:[%s0 + $0x40] sm:$0xff]
  %v42 = vld [vmem:[%s0 + $0x48] sm:$0xff]
  %v43 = vld [vmem:[%s0 + $0x50] sm:$0xff]
  %v44 = vld [vmem:[%s0 + $0x58] sm:$0xff]
  %v45 = vld [vmem:[%s0 + $0x60] sm:$0xff]
  %v46 = vld [vmem:[%s0 + $0x68] sm:$0xff]
  %v47 = vld [vmem:[%s0 + $0x70] sm:$0xff]
  %v48 = vld [vmem:[%s0 + $0x78] sm:$0xff]
  %v49 = vld [vmem:[%s2] sm:$0xff]
  %v50 = vld [vmem:[%s2 + $0x8] sm:$0xff]
  %v51 = vld [vmem:[%s2 + $0x10] sm:$0xff]
  %v52 = vld [vmem:[%s2 + $0x18] sm:$0xff]
  %v53 = vld [vmem:[%s2 + $0x20] sm:$0xff]
  %v54 = vld [vmem:[%s2 + $0x28] sm:$0xff]
  %v55 = vld [vmem:[%s2 + $0x30] sm:$0xff]
  %v56 = vld [vmem:[%s2 + $0x38] sm:$0xff]
  %v57 = vld [vmem:[%s2 + $0x40] sm:$0xff]
  %v58 = vld [vmem:[%s2 + $0x48] sm:$0xff]
  %v59 = vld [vmem:[%s2 + $0x50] sm:$0xff]
  %v60 = vld [vmem:[%s2 + $0x58] sm:$0xff]
  %v61 = vld [vmem:[%s2 + $0x60] sm:$0xff]
  %v62 = vld [vmem:[%s2 + $0x68] sm:$0xff]
  %v63 = vld [vmem:[%s2 + $0x70] sm:$0xff]
  %v64 = vld [vmem:[%s2 + $0x78] sm:$0xff]
  %65 = vmatprep.subr.mxu0 0.0
  %66 = vmatpush1.msra.mxu0 %v49
  %67 = vmatprep.subr.mxu0 0.0
  %68 = vmatpush1.msra.mxu0 %v50
  %69 = vmatprep.subr.mxu0 0.0
  %70 = vmatpush1.msra.mxu0 %v51
  %71 = vmatprep.subr.mxu0 0.0
  %72 = vmatpush1.msra.mxu0 %v52
  %73 = vmatprep.subr.mxu0 0.0
  %74 = vmatpush1.msra.mxu0 %v53
  %75 = vmatprep.subr.mxu0 0.0
  %76 = vmatpush1.msra.mxu0 %v54
  %77 = vmatprep.subr.mxu0 0.0
  %78 = vmatpush1.msra.mxu0 %v55
  %79 = vmatprep.subr.mxu0 0.0
  %80 = vmatpush1.msra.mxu0 %v56
  %81 = vmatprep.subr.mxu0 0.0
  %82 = vmatpush1.msra.mxu0 %v57
  %83 = vmatprep.subr.mxu0 0.0
  %84 = vmatpush1.msra.mxu0 %v58
  %85 = vmatprep.subr.mxu0 0.0
  %86 = vmatpush1.msra.mxu0 %v59
  %87 = vmatprep.subr.mxu0 0.0
  %88 = vmatpush1.msra.mxu0 %v60
  %89 = vmatprep.subr.mxu0 0.0
  %90 = vmatpush1.msra.mxu0 %v61
  %91 = vmatprep.subr.mxu0 0.0
  %92 = vmatpush1.msra.mxu0 %v62
  %93 = vmatprep.subr.mxu0 0.0
  %94 = vmatpush1.msra.mxu0 %v63
  %95 = vmatprep.subr.mxu0 0.0
  %96 = vmatpush1.msra.mxu0 %v64
  %97 = vmatprep.subr.mxu0 0.0
  %98 = vmatpush1.msra.mxu0 0.0
  %99 = vmatprep.subr.mxu0 0.0
  %100 = vmatpush1.msra.mxu0 0.0
  %101 = vmatprep.subr.mxu0 0.0
  %102 = vmatpush1.msra.mxu0 0.0
  %103 = vmatprep.subr.mxu0 0.0
  %104 = vmatpush1.msra.mxu0 0.0
  %105 = vmatprep.subr.mxu0 0.0
  %106 = vmatpush1.msra.mxu0 0.0
  %107 = vmatprep.subr.mxu0 0.0
  %108 = vmatpush1.msra.mxu0 0.0
  %109 = vmatprep.subr.mxu0 0.0
  %110 = vmatpush1.msra.mxu0 0.0
  %111 = vmatprep.subr.mxu0 0.0
  %112 = vmatpush1.msra.mxu0 0.0
  %113 = vmatprep.subr.mxu0 0.0
  %114 = vmatpush1.msra.mxu0 0.0
  %115 = vmatprep.subr.mxu0 0.0
  %116 = vmatpush1.msra.mxu0 0.0
  %117 = vmatprep.subr.mxu0 0.0
  %118 = vmatpush1.msra.mxu0 0.0
  %119 = vmatprep.subr.mxu0 0.0
  %120 = vmatpush1.msra.mxu0 0.0
  %121 = vmatprep.subr.mxu0 0.0
  %122 = vmatpush1.msra.mxu0 0.0
  %123 = vmatprep.subr.mxu0 0.0
  %124 = vmatpush1.msra.mxu0 0.0
  %125 = vmatprep.subr.mxu0 0.0
  %126 = vmatpush1.msra.mxu0 0.0
  %127 = vmatprep.subr.mxu0 0.0
  %128 = vmatpush1.msra.mxu0 0.0
  %129 = vmatprep.mubr.f32.mxu0 0.0
  %130 = vmatmul.mubr.f32.gmra.mrb[0].mxu0 %v33
  %v131 = vpop.f32.mrb[0].mxu0
  %v132 = vadd.f32 0.0, %v131
  %v133 = vpop.f32.mrb[0].mxu0
  %134 = vmatprep.mubr.f32.mxu0 0.0
  %135 = vmatmul.mubr.f32.gmra.mrb[0].mxu0 %v34
  %v136 = vpop.f32.mrb[0].mxu0
  %v137 = vadd.f32 0.0, %v136
  %v138 = vpop.f32.mrb[0].mxu0
  %139 = vmatprep.mubr.f32.mxu0 0.0
  %140 = vmatmul.mubr.f32.gmra.mrb[0].mxu0 %v35
  %v141 = vpop.f32.mrb[0].mxu0
  %v142 = vadd.f32 0.0, %v141
  %v143 = vpop.f32.mrb[0].mxu0
  %144 = vmatprep.mubr.f32.mxu0 0.0
  %145 = vmatmul.mubr.f32.gmra.mrb[0].mxu0 %v36
  %v146 = vpop.f32.mrb[0].mxu0
  %v147 = vadd.f32 0.0, %v146
  %v148 = vpop.f32.mrb[0].mxu0
  %149 = vmatprep.mubr.f32.mxu0 0.0
  %150 = vmatmul.mubr.f32.gmra.mrb[0].mxu0 %v37
  %v151 = vpop.f32.mrb[0].mxu0
  %v152 = vadd.f32 0.0, %v151
  %v153 = vpop.f32.mrb[0].mxu0
  %154 = vmatprep.mubr.f32.mxu0 0.0
  %155 = vmatmul.mubr.f32.gmra.mrb[0].mxu0 %v38
  %v156 = vpop.f32.mrb[0].mxu0
  %v157 = vadd.f32 0.0, %v156
  %v158 = vpop.f32.mrb[0].mxu0
  %159 = vmatprep.mubr.f32.mxu0 0.0
  %160 = vmatmul.mubr.f32.gmra.mrb[0].mxu0 %v39
  %v161 = vpop.f32.mrb[0].mxu0
  %v162 = vadd.f32 0.0, %v161
  %v163 = vpop.f32.mrb[0].mxu0
  %164 = vmatprep.mubr.f32.mxu0 0.0
  %165 = vmatmul.mubr.f32.gmra.mrb[0].mxu0 %v40
  %v166 = vpop.f32.mrb[0].mxu0
  %v167 = vadd.f32 0.0, %v166
  %v168 = vpop.f32.mrb[0].mxu0
  %169 = vmatprep.mubr.f32.mxu0 0.0
  %170 = vmatmul.mubr.f32.gmra.mrb[0].mxu0 %v41
  %v171 = vpop.f32.mrb[0].mxu0
  %v172 = vadd.f32 0.0, %v171
  %v173 = vpop.f32.mrb[0].mxu0
  %174 = vmatprep.mubr.f32.mxu0 0.0
  %175 = vmatmul.mubr.f32.gmra.mrb[0].mxu0 %v42
  %v176 = vpop.f32.mrb[0].mxu0
  %v177 = vadd.f32 0.0, %v176
  %v178 = vpop.f32.mrb[0].mxu0
  %179 = vmatprep.mubr.f32.mxu0 0.0
  %180 = vmatmul.mubr.f32.gmra.mrb[0].mxu0 %v43
  %v181 = vpop.f32.mrb[0].mxu0
  %v182 = vadd.f32 0.0, %v181
  %v183 = vpop.f32.mrb[0].mxu0
  %184 = vmatprep.mubr.f32.mxu0 0.0
  %185 = vmatmul.mubr.f32.gmra.mrb[0].mxu0 %v44
  %v186 = vpop.f32.mrb[0].mxu0
  %v187 = vadd.f32 0.0, %v186
  %v188 = vpop.f32.mrb[0].mxu0
  %189 = vmatprep.mubr.f32.mxu0 0.0
  %190 = vmatmul.mubr.f32.gmra.mrb[0].mxu0 %v45
  %v191 = vpop.f32.mrb[0].mxu0
  %v192 = vadd.f32 0.0, %v191
  %v193 = vpop.f32.mrb[0].mxu0
  %194 = vmatprep.mubr.f32.mxu0 0.0
  %195 = vmatmul.mubr.f32.gmra.mrb[0].mxu0 %v46
  %v196 = vpop.f32.mrb[0].mxu0
  %v197 = vadd.f32 0.0, %v196
  %v198 = vpop.f32.mrb[0].mxu0
  %199 = vmatprep.mubr.f32.mxu0 0.0
  %200 = vmatmul.mubr.f32.gmra.mrb[0].mxu0 %v47
  %v201 = vpop.f32.mrb[0].mxu0
  %v202 = vadd.f32 0.0, %v201
  %v203 = vpop.f32.mrb[0].mxu0
  %204 = vmatprep.mubr.f32.mxu0 0.0
  %205 = vmatmul.mubr.f32.gmra.mrb[0].mxu0 %v48
  %v206 = vpop.f32.mrb[0].mxu0
  %v207 = vadd.f32 0.0, %v206
  %v208 = vpop.f32.mrb[0].mxu0
  %209 = vdwg.mxu0
  %210 = vmatprep.subr.mxu0 0.0
  %211 = vmatpush1.msra.mxu0 %v132
  %212 = vmatprep.subr.mxu0 0.0
  %213 = vmatpush1.msra.mxu0 %v137
  %214 = vmatprep.subr.mxu0 0.0
  %215 = vmatpush1.msra.mxu0 %v142
  %216 = vmatprep.subr.mxu0 0.0
  %217 = vmatpush1.msra.mxu0 %v147
  %218 = vmatprep.subr.mxu0 0.0
  %219 = vmatpush1.msra.mxu0 %v152
  %220 = vmatprep.subr.mxu0 0.0
  %221 = vmatpush1.msra.mxu0 %v157
  %222 = vmatprep.subr.mxu0 0.0
  %223 = vmatpush1.msra.mxu0 %v162
  %224 = vmatprep.subr.mxu0 0.0
  %225 = vmatpush1.msra.mxu0 %v167
  %226 = vmatprep.subr.mxu0 0.0
  %227 = vmatpush1.msra.mxu0 %v172
  %228 = vmatprep.subr.mxu0 0.0
  %229 = vmatpush1.msra.mxu0 %v177
  %230 = vmatprep.subr.mxu0 0.0
  %231 = vmatpush1.msra.mxu0 %v182
  %232 = vmatprep.subr.mxu0 0.0
  %233 = vmatpush1.msra.mxu0 %v187
  %234 = vmatprep.subr.mxu0 0.0
  %235 = vmatpush1.msra.mxu0 %v192
  %236 = vmatprep.subr.mxu0 0.0
  %237 = vmatpush1.msra.mxu0 %v197
  %238 = vmatprep.subr.mxu0 0.0
  %239 = vmatpush1.msra.mxu0 %v202
  %240 = vmatprep.subr.mxu0 0.0
  %241 = vmatpush1.msra.mxu0 %v207
  %242 = vmatprep.subr.mxu0 0.0
  %243 = vmatpush1.msra.mxu0 0.0
  %244 = vmatprep.subr.mxu0 0.0
  %245 = vmatpush1.msra.mxu0 0.0
  %246 = vmatprep.subr.mxu0 0.0
  %247 = vmatpush1.msra.mxu0 0.0
  %248 = vmatprep.subr.mxu0 0.0
  %249 = vmatpush1.msra.mxu0 0.0
  %250 = vmatprep.subr.mxu0 0.0
  %251 = vmatpush1.msra.mxu0 0.0
  %252 = vmatprep.subr.mxu0 0.0
  %253 = vmatpush1.msra.mxu0 0.0
  %254 = vmatprep.subr.mxu0 0.0
  %255 = vmatpush1.msra.mxu0 0.0
  %256 = vmatprep.subr.mxu0 0.0
  %257 = vmatpush1.msra.mxu0 0.0
  %258 = vmatprep.subr.mxu0 0.0
  %259 = vmatpush1.msra.mxu0 0.0
  %260 = vmatprep.subr.mxu0 0.0
  %261 = vmatpush1.msra.mxu0 0.0
  %262 = vmatprep.subr.mxu0 0.0
  %263 = vmatpush1.msra.mxu0 0.0
  %264 = vmatprep.subr.mxu0 0.0
  %265 = vmatpush1.msra.mxu0 0.0
  %266 = vmatprep.subr.mxu0 0.0
  %267 = vmatpush1.msra.mxu0 0.0
  %268 = vmatprep.subr.mxu0 0.0
  %269 = vmatpush1.msra.mxu0 0.0
  %270 = vmatprep.subr.mxu0 0.0
  %271 = vmatpush1.msra.mxu0 0.0
  %272 = vmatprep.subr.mxu0 0.0
  %273 = vmatpush1.msra.mxu0 0.0
  %274 = vmatprep.mubr.f32.mxu0 0.0
  %275 = vmatmul.mubr.f32.gmra.mrb[0].mxu0 %v17
  %v276 = vpop.f32.mrb[0].mxu0
  %v277 = vadd.f32 0.0, %v276
  %v278 = vpop.f32.mrb[0].mxu0
  %279 = vmatprep.mubr.f32.mxu0 0.0
  %280 = vmatmul.mubr.f32.gmra.mrb[0].mxu0 %v18
  %v281 = vpop.f32.mrb[0].mxu0
  %v282 = vadd.f32 0.0, %v281
  %v283 = vpop.f32.mrb[0].mxu0
  %284 = vmatprep.mubr.f32.mxu0 0.0
  %285 = vmatmul.mubr.f32.gmra.mrb[0].mxu0 %v19
  %v286 = vpop.f32.mrb[0].mxu0
  %v287 = vadd.f32 0.0, %v286
  %v288 = vpop.f32.mrb[0].mxu0
  %289 = vmatprep.mubr.f32.mxu0 0.0
  %290 = vmatmul.mubr.f32.gmra.mrb[0].mxu0 %v20
  %v291 = vpop.f32.mrb[0].mxu0
  %v292 = vadd.f32 0.0, %v291
  %v293 = vpop.f32.mrb[0].mxu0
  %294 = vmatprep.mubr.f32.mxu0 0.0
  %295 = vmatmul.mubr.f32.gmra.mrb[0].mxu0 %v21
  %v296 = vpop.f32.mrb[0].mxu0
  %v297 = vadd.f32 0.0, %v296
  %v298 = vpop.f32.mrb[0].mxu0
  %299 = vmatprep.mubr.f32.mxu0 0.0
  %300 = vmatmul.mubr.f32.gmra.mrb[0].mxu0 %v22
  %v301 = vpop.f32.mrb[0].mxu0
  %v302 = vadd.f32 0.0, %v301
  %v303 = vpop.f32.mrb[0].mxu0
  %304 = vmatprep.mubr.f32.mxu0 0.0
  %305 = vmatmul.mubr.f32.gmra.mrb[0].mxu0 %v23
  %v306 = vpop.f32.mrb[0].mxu0
  %v307 = vadd.f32 0.0, %v306
  %v308 = vpop.f32.mrb[0].mxu0
  %309 = vmatprep.mubr.f32.mxu0 0.0
  %310 = vmatmul.mubr.f32.gmra.mrb[0].mxu0 %v24
  %v311 = vpop.f32.mrb[0].mxu0
  %v312 = vadd.f32 0.0, %v311
  %v313 = vpop.f32.mrb[0].mxu0
  %314 = vmatprep.mubr.f32.mxu0 0.0
  %315 = vmatmul.mubr.f32.gmra.mrb[0].mxu0 %v25
  %v316 = vpop.f32.mrb[0].mxu0
  %v317 = vadd.f32 0.0, %v316
  %v318 = vpop.f32.mrb[0].mxu0
  %319 = vmatprep.mubr.f32.mxu0 0.0
  %320 = vmatmul.mubr.f32.gmra.mrb[0].mxu0 %v26
  %v321 = vpop.f32.mrb[0].mxu0
  %v322 = vadd.f32 0.0, %v321
  %v323 = vpop.f32.mrb[0].mxu0
  %324 = vmatprep.mubr.f32.mxu0 0.0
  %325 = vmatmul.mubr.f32.gmra.mrb[0].mxu0 %v27
  %v326 = vpop.f32.mrb[0].mxu0
  %v327 = vadd.f32 0.0, %v326
  %v328 = vpop.f32.mrb[0].mxu0
  %329 = vmatprep.mubr.f32.mxu0 0.0
  %330 = vmatmul.mubr.f32.gmra.mrb[0].mxu0 %v28
  %v331 = vpop.f32.mrb[0].mxu0
  %v332 = vadd.f32 0.0, %v331
  %v333 = vpop.f32.mrb[0].mxu0
  %334 = vmatprep.mubr.f32.mxu0 0.0
  %335 = vmatmul.mubr.f32.gmra.mrb[0].mxu0 %v29
  %v336 = vpop.f32.mrb[0].mxu0
  %v337 = vadd.f32 0.0, %v336
  %v338 = vpop.f32.mrb[0].mxu0
  %339 = vmatprep.mubr.f32.mxu0 0.0
  %340 = vmatmul.mubr.f32.gmra.mrb[0].mxu0 %v30
  %v341 = vpop.f32.mrb[0].mxu0
  %v342 = vadd.f32 0.0, %v341
  %v343 = vpop.f32.mrb[0].mxu0
  %344 = vmatprep.mubr.f32.mxu0 0.0
  %345 = vmatmul.mubr.f32.gmra.mrb[0].mxu0 %v31
  %v346 = vpop.f32.mrb[0].mxu0
  %v347 = vadd.f32 0.0, %v346
  %v348 = vpop.f32.mrb[0].mxu0
  %349 = vmatprep.mubr.f32.mxu0 0.0
  %350 = vmatmul.mubr.f32.gmra.mrb[0].mxu0 %v32
  %v351 = vpop.f32.mrb[0].mxu0
  %v352 = vadd.f32 0.0, %v351
  %v353 = vpop.f32.mrb[0].mxu0
  %354 = vdwg.mxu0
  %v355 = vmax.f32 %v277, 0.0
  %v356 = vmax.f32 %v282, 0.0
  %v357 = vmax.f32 %v287, 0.0
  %v358 = vmax.f32 %v292, 0.0
  %v359 = vmax.f32 %v297, 0.0
  %v360 = vmax.f32 %v302, 0.0
  %v361 = vmax.f32 %v307, 0.0
  %v362 = vmax.f32 %v312, 0.0
  %v363 = vmax.f32 %v317, 0.0
  %v364 = vmax.f32 %v322, 0.0
  %v365 = vmax.f32 %v327, 0.0
  %v366 = vmax.f32 %v332, 0.0
  %v367 = vmax.f32 %v337, 0.0
  %v368 = vmax.f32 %v342, 0.0
  %v369 = vmax.f32 %v347, 0.0
  %v370 = vmax.f32 %v352, 0.0
  %v371 = vld [vmem:[%s3] sm:$0xff]
  %v372 = vld [vmem:[%s3 + $0x8] sm:$0xff]
  %v373 = vld [vmem:[%s3 + $0x10] sm:$0xff]
  %v374 = vld [vmem:[%s3 + $0x18] sm:$0xff]
  %v375 = vld [vmem:[%s3 + $0x20] sm:$0xff]
  %v376 = vld [vmem:[%s3 + $0x28] sm:$0xff]
  %v377 = vld [vmem:[%s3 + $0x30] sm:$0xff]
  %v378 = vld [vmem:[%s3 + $0x38] sm:$0xff]
  %v379 = vld [vmem:[%s3 + $0x40] sm:$0xff]
  %v380 = vld [vmem:[%s3 + $0x48] sm:$0xff]
  %v381 = vld [vmem:[%s3 + $0x50] sm:$0xff]
  %v382 = vld [vmem:[%s3 + $0x58] sm:$0xff]
  %v383 = vld [vmem:[%s3 + $0x60] sm:$0xff]
  %v384 = vld [vmem:[%s3 + $0x68] sm:$0xff]
  %v385 = vld [vmem:[%s3 + $0x70] sm:$0xff]
  %v386 = vld [vmem:[%s3 + $0x78] sm:$0xff]
  %387 = vmatprep.subr.mxu0 0.0
  %388 = vmatpush1.msra.mxu0 %v371
  %389 = vmatprep.subr.mxu0 0.0
  %390 = vmatpush1.msra.mxu0 %v372
  %391 = vmatprep.subr.mxu0 0.0
  %392 = vmatpush1.msra.mxu0 %v373
  %393 = vmatprep.subr.mxu0 0.0
  %394 = vmatpush1.msra.mxu0 %v374
  %395 = vmatprep.subr.mxu0 0.0
  %396 = vmatpush1.msra.mxu0 %v375
  %397 = vmatprep.subr.mxu0 0.0
  %398 = vmatpush1.msra.mxu0 %v376
  %399 = vmatprep.subr.mxu0 0.0
  %400 = vmatpush1.msra.mxu0 %v377
  %401 = vmatprep.subr.mxu0 0.0
  %402 = vmatpush1.msra.mxu0 %v378
  %403 = vmatprep.subr.mxu0 0.0
  %404 = vmatpush1.msra.mxu0 %v379
  %405 = vmatprep.subr.mxu0 0.0
  %406 = vmatpush1.msra.mxu0 %v380
  %407 = vmatprep.subr.mxu0 0.0
  %408 = vmatpush1.msra.mxu0 %v381
  %409 = vmatprep.subr.mxu0 0.0
  %410 = vmatpush1.msra.mxu0 %v382
  %411 = vmatprep.subr.mxu0 0.0
  %412 = vmatpush1.msra.mxu0 %v383
  %413 = vmatprep.subr.mxu0 0.0
  %414 = vmatpush1.msra.mxu0 %v384
  %415 = vmatprep.subr.mxu0 0.0
  %416 = vmatpush1.msra.mxu0 %v385
  %417 = vmatprep.subr.mxu0 0.0
  %418 = vmatpush1.msra.mxu0 %v386
  %419 = vmatprep.subr.mxu0 0.0
  %420 = vmatpush1.msra.mxu0 0.0
  %421 = vmatprep.subr.mxu0 0.0
  %422 = vmatpush1.msra.mxu0 0.0
  %423 = vmatprep.subr.mxu0 0.0
  %424 = vmatpush1.msra.mxu0 0.0
  %425 = vmatprep.subr.mxu0 0.0
  %426 = vmatpush1.msra.mxu0 0.0
  %427 = vmatprep.subr.mxu0 0.0
  %428 = vmatpush1.msra.mxu0 0.0
  %429 = vmatprep.subr.mxu0 0.0
  %430 = vmatpush1.msra.mxu0 0.0
  %431 = vmatprep.subr.mxu0 0.0
  %432 = vmatpush1.msra.mxu0 0.0
  %433 = vmatprep.subr.mxu0 0.0
  %434 = vmatpush1.msra.mxu0 0.0
  %435 = vmatprep.subr.mxu0 0.0
  %436 = vmatpush1.msra.mxu0 0.0
  %437 = vmatprep.subr.mxu0 0.0
  %438 = vmatpush1.msra.mxu0 0.0
  %439 = vmatprep.subr.mxu0 0.0
  %440 = vmatpush1.msra.mxu0 0.0
  %441 = vmatprep.subr.mxu0 0.0
  %442 = vmatpush1.msra.mxu0 0.0
  %443 = vmatprep.subr.mxu0 0.0
  %444 = vmatpush1.msra.mxu0 0.0
  %445 = vmatprep.subr.mxu0 0.0
  %446 = vmatpush1.msra.mxu0 0.0
  %447 = vmatprep.subr.mxu0 0.0
  %448 = vmatpush1.msra.mxu0 0.0
  %449 = vmatprep.subr.mxu0 0.0
  %450 = vmatpush1.msra.mxu0 0.0
  %451 = vmatprep.mubr.f32.mxu0 0.0
  %452 = vmatmul.mubr.f32.gmra.mrb[0].mxu0 %v355
  %v453 = vpop.f32.mrb[0].mxu0
  %v454 = vadd.f32 0.0, %v453
  %v455 = vpop.f32.mrb[0].mxu0
  %456 = vmatprep.mubr.f32.mxu0 0.0
  %457 = vmatmul.mubr.f32.gmra.mrb[0].mxu0 %v356
  %v458 = vpop.f32.mrb[0].mxu0
  %v459 = vadd.f32 0.0, %v458
  %v460 = vpop.f32.mrb[0].mxu0
  %461 = vmatprep.mubr.f32.mxu0 0.0
  %462 = vmatmul.mubr.f32.gmra.mrb[0].mxu0 %v357
  %v463 = vpop.f32.mrb[0].mxu0
  %v464 = vadd.f32 0.0, %v463
  %v465 = vpop.f32.mrb[0].mxu0
  %466 = vmatprep.mubr.f32.mxu0 0.0
  %467 = vmatmul.mubr.f32.gmra.mrb[0].mxu0 %v358
  %v468 = vpop.f32.mrb[0].mxu0
  %v469 = vadd.f32 0.0, %v468
  %v470 = vpop.f32.mrb[0].mxu0
  %471 = vmatprep.mubr.f32.mxu0 0.0
  %472 = vmatmul.mubr.f32.gmra.mrb[0].mxu0 %v359
  %v473 = vpop.f32.mrb[0].mxu0
  %v474 = vadd.f32 0.0, %v473
  %v475 = vpop.f32.mrb[0].mxu0
  %476 = vmatprep.mubr.f32.mxu0 0.0
  %477 = vmatmul.mubr.f32.gmra.mrb[0].mxu0 %v360
  %v478 = vpop.f32.mrb[0].mxu0
  %v479 = vadd.f32 0.0, %v478
  %v480 = vpop.f32.mrb[0].mxu0
  %481 = vmatprep.mubr.f32.mxu0 0.0
  %482 = vmatmul.mubr.f32.gmra.mrb[0].mxu0 %v361
  %v483 = vpop.f32.mrb[0].mxu0
  %v484 = vadd.f32 0.0, %v483
  %v485 = vpop.f32.mrb[0].mxu0
  %486 = vmatprep.mubr.f32.mxu0 0.0
  %487 = vmatmul.mubr.f32.gmra.mrb[0].mxu0 %v362
  %v488 = vpop.f32.mrb[0].mxu0
  %v489 = vadd.f32 0.0, %v488
  %v490 = vpop.f32.mrb[0].mxu0
  %491 = vmatprep.mubr.f32.mxu0 0.0
  %492 = vmatmul.mubr.f32.gmra.mrb[0].mxu0 %v363
  %v493 = vpop.f32.mrb[0].mxu0
  %v494 = vadd.f32 0.0, %v493
  %v495 = vpop.f32.mrb[0].mxu0
  %496 = vmatprep.mubr.f32.mxu0 0.0
  %497 = vmatmul.mubr.f32.gmra.mrb[0].mxu0 %v364
  %v498 = vpop.f32.mrb[0].mxu0
  %v499 = vadd.f32 0.0, %v498
  %v500 = vpop.f32.mrb[0].mxu0
  %501 = vmatprep.mubr.f32.mxu0 0.0
  %502 = vmatmul.mubr.f32.gmra.mrb[0].mxu0 %v365
  %v503 = vpop.f32.mrb[0].mxu0
  %v504 = vadd.f32 0.0, %v503
  %v505 = vpop.f32.mrb[0].mxu0
  %506 = vmatprep.mubr.f32.mxu0 0.0
  %507 = vmatmul.mubr.f32.gmra.mrb[0].mxu0 %v366
  %v508 = vpop.f32.mrb[0].mxu0
  %v509 = vadd.f32 0.0, %v508
  %v510 = vpop.f32.mrb[0].mxu0
  %511 = vmatprep.mubr.f32.mxu0 0.0
  %512 = vmatmul.mubr.f32.gmra.mrb[0].mxu0 %v367
  %v513 = vpop.f32.mrb[0].mxu0
  %v514 = vadd.f32 0.0, %v513
  %v515 = vpop.f32.mrb[0].mxu0
  %516 = vmatprep.mubr.f32.mxu0 0.0
  %517 = vmatmul.mubr.f32.gmra.mrb[0].mxu0 %v368
  %v518 = vpop.f32.mrb[0].mxu0
  %v519 = vadd.f32 0.0, %v518
  %v520 = vpop.f32.mrb[0].mxu0
  %521 = vmatprep.mubr.f32.mxu0 0.0
  %522 = vmatmul.mubr.f32.gmra.mrb[0].mxu0 %v369
  %v523 = vpop.f32.mrb[0].mxu0
  %v524 = vadd.f32 0.0, %v523
  %v525 = vpop.f32.mrb[0].mxu0
  %526 = vmatprep.mubr.f32.mxu0 0.0
  %527 = vmatmul.mubr.f32.gmra.mrb[0].mxu0 %v370
  %v528 = vpop.f32.mrb[0].mxu0
  %v529 = vadd.f32 0.0, %v528
  %v530 = vpop.f32.mrb[0].mxu0
  %531 = vdwg.mxu0
  %532 = vmatprep.subr.mxu0 0.0
  %533 = vmatpush1.msra.mxu0 %v454
  %534 = vmatprep.subr.mxu0 0.0
  %535 = vmatpush1.msra.mxu0 %v459
  %536 = vmatprep.subr.mxu0 0.0
  %537 = vmatpush1.msra.mxu0 %v464
  %538 = vmatprep.subr.mxu0 0.0
  %539 = vmatpush1.msra.mxu0 %v469
  %540 = vmatprep.subr.mxu0 0.0
  %541 = vmatpush1.msra.mxu0 %v474
  %542 = vmatprep.subr.mxu0 0.0
  %543 = vmatpush1.msra.mxu0 %v479
  %544 = vmatprep.subr.mxu0 0.0
  %545 = vmatpush1.msra.mxu0 %v484
  %546 = vmatprep.subr.mxu0 0.0
  %547 = vmatpush1.msra.mxu0 %v489
  %548 = vmatprep.subr.mxu0 0.0
  %549 = vmatpush1.msra.mxu0 %v494
  %550 = vmatprep.subr.mxu0 0.0
  %551 = vmatpush1.msra.mxu0 %v499
  %552 = vmatprep.subr.mxu0 0.0
  %553 = vmatpush1.msra.mxu0 %v504
  %554 = vmatprep.subr.mxu0 0.0
  %555 = vmatpush1.msra.mxu0 %v509
  %556 = vmatprep.subr.mxu0 0.0
  %557 = vmatpush1.msra.mxu0 %v514
  %558 = vmatprep.subr.mxu0 0.0
  %559 = vmatpush1.msra.mxu0 %v519
  %560 = vmatprep.subr.mxu0 0.0
  %561 = vmatpush1.msra.mxu0 %v524
  %562 = vmatprep.subr.mxu0 0.0
  %563 = vmatpush1.msra.mxu0 %v529
  %564 = vmatprep.subr.mxu0 0.0
  %565 = vmatpush1.msra.mxu0 0.0
  %566 = vmatprep.subr.mxu0 0.0
  %567 = vmatpush1.msra.mxu0 0.0
  %568 = vmatprep.subr.mxu0 0.0
  %569 = vmatpush1.msra.mxu0 0.0
  %570 = vmatprep.subr.mxu0 0.0
  %571 = vmatpush1.msra.mxu0 0.0
  %572 = vmatprep.subr.mxu0 0.0
  %573 = vmatpush1.msra.mxu0 0.0
  %574 = vmatprep.subr.mxu0 0.0
  %575 = vmatpush1.msra.mxu0 0.0
  %576 = vmatprep.subr.mxu0 0.0
  %577 = vmatpush1.msra.mxu0 0.0
  %578 = vmatprep.subr.mxu0 0.0
  %579 = vmatpush1.msra.mxu0 0.0
  %580 = vmatprep.subr.mxu0 0.0
  %581 = vmatpush1.msra.mxu0 0.0
  %582 = vmatprep.subr.mxu0 0.0
  %583 = vmatpush1.msra.mxu0 0.0
  %584 = vmatprep.subr.mxu0 0.0
  %585 = vmatpush1.msra.mxu0 0.0
  %586 = vmatprep.subr.mxu0 0.0
  %587 = vmatpush1.msra.mxu0 0.0
  %588 = vmatprep.subr.mxu0 0.0
  %589 = vmatpush1.msra.mxu0 0.0
  %590 = vmatprep.subr.mxu0 0.0
  %591 = vmatpush1.msra.mxu0 0.0
  %592 = vmatprep.subr.mxu0 0.0
  %593 = vmatpush1.msra.mxu0 0.0
  %594 = vmatprep.subr.mxu0 0.0
  %595 = vmatpush1.msra.mxu0 0.0
  %596 = vmatprep.mubr.f32.mxu0 0.0
  %597 = vmatmul.mubr.f32.gmra.mrb[0].mxu0 %v17
  %v598 = vpop.f32.mrb[0].mxu0
  %v599 = vadd.f32 0.0, %v598
  %v600 = vpop.f32.mrb[0].mxu0
  %601 = vmatprep.mubr.f32.mxu0 0.0
  %602 = vmatmul.mubr.f32.gmra.mrb[0].mxu0 %v18
  %v603 = vpop.f32.mrb[0].mxu0
  %v604 = vadd.f32 0.0, %v603
  %v605 = vpop.f32.mrb[0].mxu0
  %606 = vmatprep.mubr.f32.mxu0 0.0
  %607 = vmatmul.mubr.f32.gmra.mrb[0].mxu0 %v19
  %v608 = vpop.f32.mrb[0].mxu0
  %v609 = vadd.f32 0.0, %v608
  %v610 = vpop.f32.mrb[0].mxu0
  %611 = vmatprep.mubr.f32.mxu0 0.0
  %612 = vmatmul.mubr.f32.gmra.mrb[0].mxu0 %v20
  %v613 = vpop.f32.mrb[0].mxu0
  %v614 = vadd.f32 0.0, %v613
  %v615 = vpop.f32.mrb[0].mxu0
  %616 = vmatprep.mubr.f32.mxu0 0.0
  %617 = vmatmul.mubr.f32.gmra.mrb[0].mxu0 %v21
  %v618 = vpop.f32.mrb[0].mxu0
  %v619 = vadd.f32 0.0, %v618
  %v620 = vpop.f32.mrb[0].mxu0
  %621 = vmatprep.mubr.f32.mxu0 0.0
  %622 = vmatmul.mubr.f32.gmra.mrb[0].mxu0 %v22
  %v623 = vpop.f32.mrb[0].mxu0
  %v624 = vadd.f32 0.0, %v623
  %v625 = vpop.f32.mrb[0].mxu0
  %626 = vmatprep.mubr.f32.mxu0 0.0
  %627 = vmatmul.mubr.f32.gmra.mrb[0].mxu0 %v23
  %v628 = vpop.f32.mrb[0].mxu0
  %v629 = vadd.f32 0.0, %v628
  %v630 = vpop.f32.mrb[0].mxu0
  %631 = vmatprep.mubr.f32.mxu0 0.0
  %632 = vmatmul.mubr.f32.gmra.mrb[0].mxu0 %v24
  %v633 = vpop.f32.mrb[0].mxu0
  %v634 = vadd.f32 0.0, %v633
  %v635 = vpop.f32.mrb[0].mxu0
  %636 = vmatprep.mubr.f32.mxu0 0.0
  %637 = vmatmul.mubr.f32.gmra.mrb[0].mxu0 %v25
  %v638 = vpop.f32.mrb[0].mxu0
  %v639 = vadd.f32 0.0, %v638
  %v640 = vpop.f32.mrb[0].mxu0
  %641 = vmatprep.mubr.f32.mxu0 0.0
  %642 = vmatmul.mubr.f32.gmra.mrb[0].mxu0 %v26
  %v643 = vpop.f32.mrb[0].mxu0
  %v644 = vadd.f32 0.0, %v643
  %v645 = vpop.f32.mrb[0].mxu0
  %646 = vmatprep.mubr.f32.mxu0 0.0
  %647 = vmatmul.mubr.f32.gmra.mrb[0].mxu0 %v27
  %v648 = vpop.f32.mrb[0].mxu0
  %v649 = vadd.f32 0.0, %v648
  %v650 = vpop.f32.mrb[0].mxu0
  %651 = vmatprep.mubr.f32.mxu0 0.0
  %652 = vmatmul.mubr.f32.gmra.mrb[0].mxu0 %v28
  %v653 = vpop.f32.mrb[0].mxu0
  %v654 = vadd.f32 0.0, %v653
  %v655 = vpop.f32.mrb[0].mxu0
  %656 = vmatprep.mubr.f32.mxu0 0.0
  %657 = vmatmul.mubr.f32.gmra.mrb[0].mxu0 %v29
  %v658 = vpop.f32.mrb[0].mxu0
  %v659 = vadd.f32 0.0, %v658
  %v660 = vpop.f32.mrb[0].mxu0
  %661 = vmatprep.mubr.f32.mxu0 0.0
  %662 = vmatmul.mubr.f32.gmra.mrb[0].mxu0 %v30
  %v663 = vpop.f32.mrb[0].mxu0
  %v664 = vadd.f32 0.0, %v663
  %v665 = vpop.f32.mrb[0].mxu0
  %666 = vmatprep.mubr.f32.mxu0 0.0
  %667 = vmatmul.mubr.f32.gmra.mrb[0].mxu0 %v31
  %v668 = vpop.f32.mrb[0].mxu0
  %v669 = vadd.f32 0.0, %v668
  %v670 = vpop.f32.mrb[0].mxu0
  %671 = vmatprep.mubr.f32.mxu0 0.0
  %672 = vmatmul.mubr.f32.gmra.mrb[0].mxu0 %v32
  %v673 = vpop.f32.mrb[0].mxu0
  %v674 = vadd.f32 0.0, %v673
  %v675 = vpop.f32.mrb[0].mxu0
  %676 = vdwg.mxu0
  %v677 = vmax.f32 %v599, 0.0
  %v678 = vmax.f32 %v604, 0.0
  %v679 = vmax.f32 %v609, 0.0
  %v680 = vmax.f32 %v614, 0.0
  %v681 = vmax.f32 %v619, 0.0
  %v682 = vmax.f32 %v624, 0.0
  %v683 = vmax.f32 %v629, 0.0
  %v684 = vmax.f32 %v634, 0.0
  %v685 = vmax.f32 %v639, 0.0
  %v686 = vmax.f32 %v644, 0.0
  %v687 = vmax.f32 %v649, 0.0
  %v688 = vmax.f32 %v654, 0.0
  %v689 = vmax.f32 %v659, 0.0
  %v690 = vmax.f32 %v664, 0.0
  %v691 = vmax.f32 %v669, 0.0
  %v692 = vmax.f32 %v674, 0.0
  %693 = vst [vmem:[%s4] sm:$0xff] %v677
  %694 = vst [vmem:[%s4 + $0x8] sm:$0xff] %v678
  %695 = vst [vmem:[%s4 + $0x10] sm:$0xff] %v679
  %696 = vst [vmem:[%s4 + $0x18] sm:$0xff] %v680
  %697 = vst [vmem:[%s4 + $0x20] sm:$0xff] %v681
  %698 = vst [vmem:[%s4 + $0x28] sm:$0xff] %v682
  %699 = vst [vmem:[%s4 + $0x30] sm:$0xff] %v683
  %700 = vst [vmem:[%s4 + $0x38] sm:$0xff] %v684
  %701 = vst [vmem:[%s4 + $0x40] sm:$0xff] %v685
  %702 = vst [vmem:[%s4 + $0x48] sm:$0xff] %v686
  %703 = vst [vmem:[%s4 + $0x50] sm:$0xff] %v687
  %704 = vst [vmem:[%s4 + $0x58] sm:$0xff] %v688
  %705 = vst [vmem:[%s4 + $0x60] sm:$0xff] %v689
  %706 = vst [vmem:[%s4 + $0x68] sm:$0xff] %v690
  %707 = vst [vmem:[%s4 + $0x70] sm:$0xff] %v691
  %708 = vst [vmem:[%s4 + $0x78] sm:$0xff] %v692
  // Predicated region
  $region18: #{graph_convolution_forward.1} parent=0 // pred_check
    _
  $region19: #{graph_convolution_forward.1} parent=0 // pred_check_branch
    %710 = sbr.rel (0) target = $region21
  $region20: #{graph_convolution_forward.1} parent=0 // pred_region
    _
  $region21: #{graph_convolution_forward.1} parent=0 // pred_fallthru
    _
  // Predicated region
  $region22: #{graph_convolution_forward.1} parent=0 // pred_check
    _
  $region23: #{graph_convolution_forward.1} parent=0 // pred_check_branch
    %712 = sbr.rel (0) target = $region25
  $region24: #{graph_convolution_forward.1} parent=0 // pred_region
    _
  $region25: #{graph_convolution_forward.1} parent=0 // pred_fallthru
    _

</llo_original>
